<compile_context>
chip_gen: v5e
topology: v5e:2x2
jax: 0.10.0
libtpu: 0.0.40
codegen_flags: <defaults>
</compile_context>

<pallas_src>
import functools
import math

import jax
import jax.numpy as jnp
from jax.experimental import pallas as pl
from jax.experimental.pallas import tpu as pltpu


# ---------------------------------------------------------------------------
# Kernel
# ---------------------------------------------------------------------------
def _llama_mlp_kernel(x_ref, wgu_ref, wd_ref, o_ref, acc_ref, *, ti):
    # x_ref:   (tm, H)      token tile
    # wgu_ref: (H, 2*ti)    fused [gate tile | up tile] weights (in, out layout)
    # wd_ref:  (ti, H)      down_proj weight tile (in, out layout)
    # o_ref:   (tm, H)      output tile (resident across the i axis)
    # acc_ref: (tm, H)      f32 VMEM accumulator
    i = pl.program_id(1)

    x = x_ref[...]
    gu = jnp.dot(x, wgu_ref[...], preferred_element_type=jnp.float32)  # (tm, 2*ti)
    g = gu[:, :ti]
    u = gu[:, ti:]
    h = (g * jax.nn.sigmoid(g)) * u                                    # SiLU(g) * u
    partial = jnp.dot(h.astype(wd_ref.dtype), wd_ref[...],
                      preferred_element_type=jnp.float32)              # (tm, H)

    @pl.when(i == 0)
    def _():
        acc_ref[...] = partial

    @pl.when(i > 0)
    def _():
        acc_ref[...] += partial

    @pl.when(i == pl.num_programs(1) - 1)
    def _():
        o_ref[...] = acc_ref[...].astype(o_ref.dtype)


# ---------------------------------------------------------------------------
# Weight preparation (run ONCE at weight-load time, not per forward call)
# ---------------------------------------------------------------------------
def _pick_intermediate_tile(I, tile_i):
    preferred = 512 if tile_i is None else tile_i
    if I <= preferred:
        return I
    t = (preferred // 128) * 128
    while t >= 128:
        if I % t == 0:
            return t
        t -= 128
    return I  # fall back to the full intermediate dim


def prepare_llama_mlp_weights(gate_w, up_w, down_w, *, tile_i=None):
    """Transpose + pack the torch nn.Linear weights once.

    gate_w, up_w: (I, H)  torch Linear layout (out, in)
    down_w:       (H, I)
    Returns (w_gu, w_d, ti):
      w_gu: (H, 2*I), laid out so intermediate tile i occupies the contiguous
            column block [i*2*ti, (i+1)*2*ti) as [gate_tile_i | up_tile_i].
      w_d:  (I, H)
      ti:   intermediate tile size baked into the packing.
    """
    I, H = gate_w.shape
    ti = _pick_intermediate_tile(I, tile_i)
    n_i = I // ti
    wg_t = jnp.transpose(gate_w).reshape(H, n_i, ti)
    wu_t = jnp.transpose(up_w).reshape(H, n_i, ti)
    w_gu = jnp.concatenate([wg_t, wu_t], axis=-1).reshape(H, 2 * I)
    w_d = jnp.transpose(down_w)  # (I, H)
    return w_gu, w_d, ti


# ---------------------------------------------------------------------------
# Wrapper
# ---------------------------------------------------------------------------
def _round_up(x, m):
    return ((x + m - 1) // m) * m


def _vmem_budget_bytes():
    cap = None
    try:
        cap = int(pltpu.get_tpu_info().vmem_capacity_bytes)
    except Exception:
        cap = None
    if not cap or cap <= 0:
        cap = 64 * 1024 * 1024  # conservative: v7x per-TensorCore VMEM
    return max(int(cap * 0.85), 32 * 1024 * 1024)


def llama_mlp(x, w_gu, w_d, ti, *, tile_m=None, vmem_budget_bytes=None):
    """LlamaMLP.forward (hidden_act='silu', mlp_bias=False).

    x:    (..., H)
    w_gu: (H, 2*I)  from prepare_llama_mlp_weights
    w_d:  (I, H)    from prepare_llama_mlp_weights
    ti:   intermediate tile size used when packing w_gu.

    The pretraining_tp > 1 branch of the reference module is numerically
    identical to the tp == 1 branch, so this single kernel covers both.
    """
    # TODO(synk): optional mlp_bias support (per-tile gate/up bias add + final
    # down bias at the finalize step); HF / MiniGPT4 Llama default is bias-free.
    # TODO(synk): v7x decode (single m tile): split the I reduction across the
    # two TensorCores with per-core partial accumulators + cross-core add.
    orig_shape = x.shape
    H = orig_shape[-1]
    I = w_d.shape[0]
    assert w_gu.shape == (H, 2 * I), (w_gu.shape, (H, 2 * I))
    assert I % ti == 0
    M = math.prod(orig_shape[:-1])
    out_dtype = x.dtype

    x2d = x.reshape(M, H)
    x_bytes = jnp.dtype(x.dtype).itemsize
    w_bytes = jnp.dtype(w_gu.dtype).itemsize

    # Sublane granularity for the (tm, H) token blocks.
    sub = {4: 8, 2: 16, 1: 32}.get(x_bytes, 8)
    m_padded_min = _round_up(M, sub)

    budget = vmem_budget_bytes if vmem_budget_bytes is not None else _vmem_budget_bytes()

    def working_set(tm):
        # 2x double-buffered inputs/outputs + f32 accumulator.
        w_blk = (H * 2 * ti + ti * H) * w_bytes * 2
        x_blk = tm * H * x_bytes * 2
        o_blk = tm * H * jnp.dtype(out_dtype).itemsize * 2
        acc = tm * H * 4
        return w_blk + x_blk + o_blk + acc

    tm = min(1024 if tile_m is None else tile_m, m_padded_min)
    tm = _round_up(tm, sub)
    while tm > sub and working_set(tm) > budget:
        tm = max(sub, _round_up(tm // 2, sub))

    M_pad = _round_up(M, tm)
    if M_pad != M:
        x2d = jnp.pad(x2d, ((0, M_pad - M), (0, 0)))

    n_m = M_pad // tm
    n_i = I // ti
    grid = (n_m, n_i)

    ws = working_set(tm)
    vmem_limit = int(min(budget, max(ws * 1.4 + (2 << 20), 16 << 20)))
    vmem_limit = int(max(vmem_limit, ws + (1 << 20)))

    cost = pl.CostEstimate(
        flops=int(6 * M_pad * H * I),
        transcendentals=int(M_pad * I),
        # Weights are re-streamed once per m tile; x read + out written once.
        bytes_accessed=int(n_m * 3 * H * I * w_bytes + 2 * M_pad * H * x_bytes),
    )

    out = pl.pallas_call(
        functools.partial(_llama_mlp_kernel, ti=ti),
        out_shape=jax.ShapeDtypeStruct((M_pad, H), out_dtype),
        grid_spec=pltpu.PrefetchScalarGridSpec(
            num_scalar_prefetch=0,
            grid=grid,
            in_specs=[
                pl.BlockSpec((tm, H), lambda m, i: (m, 0)),        # x
                pl.BlockSpec((H, 2 * ti), lambda m, i: (0, i)),    # fused gate|up
                pl.BlockSpec((ti, H), lambda m, i: (i, 0)),        # down_proj
            ],
            out_specs=pl.BlockSpec((tm, H), lambda m, i: (m, 0)),
            scratch_shapes=[pltpu.VMEM((tm, H), jnp.float32)],
        ),
        compiler_params=pltpu.CompilerParams(
            dimension_semantics=("parallel", "arbitrary"),
            vmem_limit_bytes=vmem_limit,
        ),
        cost_estimate=cost,
    )(x2d, w_gu, w_d)

    if M_pad != M:
        out = out[:M]
    return out.reshape(orig_shape)


# ---------------------------------------------------------------------------
# Pure-JAX reference (transcription of the PyTorch forward, tp == 1 path)
# ---------------------------------------------------------------------------
def _reference(x, gate_w, up_w, down_w):
    g = x @ gate_w.T
    u = x @ up_w.T
    h = (g * jax.nn.sigmoid(g)) * u  # SiLU
    return h @ down_w.T


if __name__ == "__main__":
    # Small deterministic setup consistent with the module:
    #   batch=2, seq=8, hidden_size=256, intermediate_size=512, silu, no bias.
    B, S, H, I = 2, 8, 256, 512

    key = jax.random.PRNGKey(0)
    kx, kg, ku, kd = jax.random.split(key, 4)
    x = jax.random.normal(kx, (B, S, H), dtype=jnp.float32)
    gate_w = jax.random.normal(kg, (I, H), dtype=jnp.float32) * 0.05
    up_w = jax.random.normal(ku, (I, H), dtype=jnp.float32) * 0.05
    down_w = jax.random.normal(kd, (H, I), dtype=jnp.float32) * 0.05

    # --- Test 1: tile_i=256 -> 2 reduction steps (exercises the accumulator). ---
    w_gu_a, w_d_a, ti_a = prepare_llama_mlp_weights(gate_w, up_w, down_w, tile_i=256)
    out = llama_mlp(x, w_gu_a, w_d_a, ti_a)
    jax.block_until_ready(out)
    ref = _reference(x, gate_w, up_w, down_w)
    assert out.shape == (B, S, H) and out.dtype == x.dtype
    assert jnp.allclose(out, ref, atol=1e-2, rtol=1e-2), (
        f"LlamaMLP kernel mismatch: max abs err = {float(jnp.max(jnp.abs(out - ref)))}"
    )

    # --- Test 2: default packing + ragged token count (exercises M padding). ---
    w_gu_b, w_d_b, ti_b = prepare_llama_mlp_weights(gate_w, up_w, down_w)
    x2 = x[:, :5, :]  # M = 10, not a tile multiple
    out2 = llama_mlp(x2, w_gu_b, w_d_b, ti_b)
    jax.block_until_ready(out2)
    ref2 = _reference(x2, gate_w, up_w, down_w)
    assert out2.shape == x2.shape
    assert jnp.allclose(out2, ref2, atol=1e-2, rtol=1e-2), (
        f"ragged-M mismatch: max abs err = {float(jnp.max(jnp.abs(out2 - ref2)))}"
    )

    print("KERNEL_OK")
</pallas_src>

<mosaic_0001>
module attributes {stable_mosaic.version = 11 : i64} {
  func.func @_llama_mlp_kernel(%arg0: i32, %arg1: i32, %arg2: memref<16x256xf32, #tpu.memory_space<vmem>>, %arg3: memref<256x512xf32, #tpu.memory_space<vmem>>, %arg4: memref<256x256xf32, #tpu.memory_space<vmem>>, %arg5: memref<16x256xf32, #tpu.memory_space<vmem>>, %arg6: memref<16x256xf32, #tpu.memory_space<vmem>>) attributes {dimension_semantics = [#tpu.dimension_semantics<parallel>, #tpu.dimension_semantics<arbitrary>], iteration_bounds = array<i64: 1, 2>, scalar_prefetch = 0 : i64, scratch_operands = 1 : i64, tpu.core_type = #tpu.core_type<tc>, window_params = [{transform_indices = @transform_0, window_bounds = array<i64: 16, 256>}, {transform_indices = @transform_1, window_bounds = array<i64: 256, 512>}, {transform_indices = @transform_2, window_bounds = array<i64: 256, 256>}, {transform_indices = @transform_3, window_bounds = array<i64: 16, 256>}]} {
    %c0 = arith.constant 0 : index
    %c0_0 = arith.constant 0 : index
    %0 = vector.load %arg2[%c0, %c0_0] : memref<16x256xf32, #tpu.memory_space<vmem>>, vector<16x256xf32>
    %c0_1 = arith.constant 0 : index
    %c0_2 = arith.constant 0 : index
    %1 = vector.load %arg3[%c0_1, %c0_2] : memref<256x512xf32, #tpu.memory_space<vmem>>, vector<256x512xf32>
    %cst = arith.constant dense<0.000000e+00> : vector<16x512xf32>
    %2 = tpu.matmul %0, %1, %cst {dimension_numbers = #tpu.dot_dimension_numbers<[1], [0], [0], [1], [0, 0, 1, 1], [], []>} : vector<16x256xf32>, vector<256x512xf32>, vector<16x512xf32> -> vector<16x512xf32>
    %3 = vector.extract_strided_slice %2 {offsets = [0, 0], sizes = [16, 256], strides = [1, 1]} : vector<16x512xf32> to vector<16x256xf32>
    %4 = vector.extract_strided_slice %2 {offsets = [0, 256], sizes = [16, 256], strides = [1, 1]} : vector<16x512xf32> to vector<16x256xf32>
    %5 = arith.negf %3 : vector<16x256xf32>
    %6 = math.exp %5 : vector<16x256xf32>
    %cst_3 = arith.constant 1.000000e+00 : f32
    %7 = vector.broadcast %cst_3 : f32 to vector<16x256xf32>
    %8 = arith.addf %7, %6 : vector<16x256xf32>
    %9 = arith.divf %7, %8 : vector<16x256xf32>
    %10 = arith.mulf %3, %9 : vector<16x256xf32>
    %11 = arith.mulf %10, %4 : vector<16x256xf32>
    %c0_4 = arith.constant 0 : index
    %c0_5 = arith.constant 0 : index
    %12 = vector.load %arg4[%c0_4, %c0_5] : memref<256x256xf32, #tpu.memory_space<vmem>>, vector<256x256xf32>
    %cst_6 = arith.constant dense<0.000000e+00> : vector<16x256xf32>
    %13 = tpu.matmul %11, %12, %cst_6 {dimension_numbers = #tpu.dot_dimension_numbers<[1], [0], [0], [1], [0, 0, 1, 1], [], []>} : vector<16x256xf32>, vector<256x256xf32>, vector<16x256xf32> -> vector<16x256xf32>
    %c0_i32 = arith.constant 0 : i32
    %14 = arith.cmpi eq, %arg1, %c0_i32 : i32
    %15 = arith.extui %14 : i1 to i32
    %c0_i32_7 = arith.constant 0 : i32
    %16 = arith.cmpi ne, %15, %c0_i32_7 : i32
    scf.if %16 {
      %c0_11 = arith.constant 0 : index
      %c0_12 = arith.constant 0 : index
      %23 = vector.load %arg6[%c0_11, %c0_12] : memref<16x256xf32, #tpu.memory_space<vmem>>, vector<16x256xf32>
      tpu.vector_store %arg6[%c0_11, %c0_12], %13 {strides = array<i32>} : memref<16x256xf32, #tpu.memory_space<vmem>>, vector<16x256xf32>,
    } else {
    }
    %c0_i32_8 = arith.constant 0 : i32
    %17 = arith.cmpi sgt, %arg1, %c0_i32_8 : i32
    %18 = arith.extui %17 : i1 to i32
    %c0_i32_9 = arith.constant 0 : i32
    %19 = arith.cmpi ne, %18, %c0_i32_9 : i32
    scf.if %19 {
      %c0_11 = arith.constant 0 : index
      %c0_12 = arith.constant 0 : index
      %23 = vector.load %arg6[%c0_11, %c0_12] : memref<16x256xf32, #tpu.memory_space<vmem>>, vector<16x256xf32>
      %24 = arith.addf %23, %13 : vector<16x256xf32>
      %c0_13 = arith.constant 0 : index
      %c0_14 = arith.constant 0 : index
      %25 = vector.load %arg6[%c0_13, %c0_14] : memref<16x256xf32, #tpu.memory_space<vmem>>, vector<16x256xf32>
      tpu.vector_store %arg6[%c0_13, %c0_14], %24 {strides = array<i32>} : memref<16x256xf32, #tpu.memory_space<vmem>>, vector<16x256xf32>,
    } else {
    }
    %c1_i32 = arith.constant 1 : i32
    %20 = arith.cmpi eq, %arg1, %c1_i32 : i32
    %21 = arith.extui %20 : i1 to i32
    %c0_i32_10 = arith.constant 0 : i32
    %22 = arith.cmpi ne, %21, %c0_i32_10 : i32
    scf.if %22 {
      %c0_11 = arith.constant 0 : index
      %c0_12 = arith.constant 0 : index
      %23 = vector.load %arg6[%c0_11, %c0_12] : memref<16x256xf32, #tpu.memory_space<vmem>>, vector<16x256xf32>
      %c0_13 = arith.constant 0 : index
      %c0_14 = arith.constant 0 : index
      %24 = vector.load %arg5[%c0_13, %c0_14] : memref<16x256xf32, #tpu.memory_space<vmem>>, vector<16x256xf32>
      tpu.vector_store %arg5[%c0_13, %c0_14], %23 {strides = array<i32>} : memref<16x256xf32, #tpu.memory_space<vmem>>, vector<16x256xf32>,
    } else {
    }
    return
  }
  func.func @transform_0(%arg0: i32, %arg1: i32) -> (i32, i32) {
    %c0_i32 = arith.constant 0 : i32
    %c0_i32_0 = arith.constant 0 : i32
    return %arg0, %c0_i32 : i32, i32
  }
  func.func @transform_1(%arg0: i32, %arg1: i32) -> (i32, i32) {
    %c0_i32 = arith.constant 0 : i32
    %c0_i32_0 = arith.constant 0 : i32
    return %c0_i32, %arg1 : i32, i32
  }
  func.func @transform_2(%arg0: i32, %arg1: i32) -> (i32, i32) {
    %c0_i32 = arith.constant 0 : i32
    %c0_i32_0 = arith.constant 0 : i32
    return %arg1, %c0_i32 : i32, i32
  }
  func.func @transform_3(%arg0: i32, %arg1: i32) -> (i32, i32) {
    %c0_i32 = arith.constant 0 : i32
    %c0_i32_0 = arith.constant 0 : i32
    return %arg0, %c0_i32 : i32, i32
  }
}

</mosaic_0001>

<llo_original>
// kernel: tpu_custom_call.1
$region0: #{tpu_custom_call.1}
  #allocation0 [shape = 'u32[]', space=smem, size = 0x4, offset = 0x4, fixed_abs, tag = 'smem constant byte address 0x4 - core index']
  #allocation1 [shape = 'u32[72,128]{1,0:T(1,128)}', space=vmem, size = 0x9000, scoped, tag = 'internal scratch']
  #allocation2 [shape = 'f32[16,256]{1,0:T(8,128)}', space=vmem, size = 0x4000, scoped, tag = 'scratch operand']
  %s0 = inlined_call_operand.hbm [shape: f32[16,256], index: 0, kind: input, shape index: {}]
  %s1 = inlined_call_operand.hbm [shape: f32[256,1024], index: 1, kind: input, shape index: {}]
  %s2 = inlined_call_operand.hbm [shape: f32[512,256], index: 2, kind: input, shape index: {}]
  %s3 = inlined_call_operand.hbm [shape: f32[16,256], index: 3, kind: output, shape index: {}]
  %s4 = sld [smem:[#allocation0]]
  $region69: #{tpu_custom_call.1} parent=0
    _
  %s6 = ssub.s32 1, %s4
  %s7 = scalar_select 0, %s6, %s4
  $region1: #{tpu_custom_call.1} parent=0
    #allocation3 [shape = 'u8[16384]{0}', space=vmem, size = 0x4000, scoped, tag = 'input window, operand 0, single buffered']
    #allocation4 [shape = 's32[2]{0}', space=sflag, size = 0x8, scoped, tag = 'scoped memory for tpu_custom_call.1']
    #allocation5 [shape = 's32[2]{0}', space=sflag, size = 0x8, scoped, tag = 'scoped memory for tpu_custom_call.1']
    #allocation6 [shape = 'u8[1048576]{0}', space=vmem, size = 0x100000, scoped, tag = 'input window, operand 1']
    #allocation7 [shape = 's32[2]{0}', space=sflag, size = 0x8, scoped, tag = 'scoped memory for tpu_custom_call.1']
    #allocation8 [shape = 'u8[524288]{0}', space=vmem, size = 0x80000, scoped, tag = 'input window, operand 2']
    #allocation9 [shape = 'u8[16384]{0}', space=vmem, size = 0x4000, scoped, tag = 'output window, operand 0, single buffered']
    %8 = vsyncpa [#allocation4], 0
    %9 = vsyncpa [#allocation7], 0
    %s10 = scalar_lea.sflag [#allocation7], 1
    %11 = vsyncpa %s10, 0
    %12 = vsyncpa [#allocation5], 0
    loop: start=0, step=1, limit=4
    $region2: #{tpu_custom_call.1} parent=1 // loop_pre_header
      _
    $region3: #{tpu_custom_call.1} parent=1 // loop_header
      %s14 = sphi 0, %s18
      %p15 = scmp.ge.s32.totalorder %s14, 4
      %s21 = sphi 0, %s33
      %s22 = sphi 0, %s29
      %s23 = sphi 0, %s21
      %s24 = sphi 0, %s22
      %s25 = sphi 0, %s23
      %s26 = sphi 0, %s24
      %s36 = sphi 0, %s38
      %s39 = sphi 0, %s36
      %s40 = sphi 0, %s39
      %s56 = sphi 0, %s40
      %s62 = sphi 0, %s64
      %s65 = sphi 0, %s62
      %s66 = sphi 0, %s65
      %s82 = sphi 0, %s66
      %s88 = sphi 0, %s90
      %s91 = sphi 0, %s88
      %s92 = sphi 0, %s91
      %s108 = sphi 0, %s92
      %s114 = sphi 0, %s116
      %s117 = sphi 0, %s114
      %s118 = sphi 0, %s117
      %s134 = sphi 0, %s118
    $region4: #{tpu_custom_call.1} parent=1 // loop_header_branch
      %17 = sbr.rel (%p15) target = $region8
    $region5: #{tpu_custom_call.1} parent=1 // loop_body
      %s19 = ssub.s32 %s14, 1
      %s20 = ssub.s32 %s14, 2
      %s27 = sadd.s32 1, %s22
      %p28 = scmp.ge.s32.totalorder %s27, 2
      %s29 = scalar_select %p28, 0, %s27
      %s30 = sadd.s32 1, %s21
      %s31 = scalar_select %p28, %s30, %s21
      %p32 = scmp.ge.s32.totalorder %s31, 1
      %s33 = scalar_select %p32, 0, %s31
      %s34 = ssub.s32 %s21, %s33
      %p35 = scmp.eq.s32.totalorder %s34, 0
      %s37 = sadd.s32 %s36, 1
      %s38 = scalar_select %p35, %s36, %s37
      %p41 = pneg %p35
      %p42 = scmp.eq.s32.totalorder %s14, 1
      %p43 = por %p41, %p42
      %p44 = scmp.ne.s32.totalorder %s36, %s39
      %p45 = scmp.eq.s32.totalorder %s14, 0
      %p46 = por %p44, %p45
      %p47 = scmp.ne.s32.totalorder %s36, %s39
      %p48 = scmp.eq.s32.totalorder %s19, 1
      %p49 = por %p47, %p48
      %p50 = scmp.ne.s32.totalorder %s39, %s40
      %p51 = scmp.eq.s32.totalorder %s19, 0
      %p52 = por %p50, %p51
      %p53 = scmp.ne.s32.totalorder %s39, %s40
      %p54 = scmp.eq.s32.totalorder %s20, 1
      %p55 = por %p53, %p54
      %p57 = scmp.ne.s32.totalorder %s40, %s56
      %p58 = scmp.eq.s32.totalorder %s20, 0
      %p59 = por %p57, %p58
      %s60 = ssub.s32 %s22, %s29
      %p61 = scmp.eq.s32.totalorder %s60, 0
      %s63 = sadd.s32 %s62, 1
      %s64 = scalar_select %p61, %s62, %s63
      %p67 = pneg %p61
      %p68 = scmp.eq.s32.totalorder %s14, 1
      %p69 = por %p67, %p68
      %p70 = scmp.ne.s32.totalorder %s62, %s65
      %p71 = scmp.eq.s32.totalorder %s14, 0
      %p72 = por %p70, %p71
      %p73 = scmp.ne.s32.totalorder %s62, %s65
      %p74 = scmp.eq.s32.totalorder %s19, 1
      %p75 = por %p73, %p74
      %p76 = scmp.ne.s32.totalorder %s65, %s66
      %p77 = scmp.eq.s32.totalorder %s19, 0
      %p78 = por %p76, %p77
      %p79 = scmp.ne.s32.totalorder %s65, %s66
      %p80 = scmp.eq.s32.totalorder %s20, 1
      %p81 = por %p79, %p80
      %p83 = scmp.ne.s32.totalorder %s66, %s82
      %p84 = scmp.eq.s32.totalorder %s20, 0
      %p85 = por %p83, %p84
      %s86 = ssub.s32 %s22, %s29
      %p87 = scmp.eq.s32.totalorder %s86, 0
      %s89 = sadd.s32 %s88, 1
      %s90 = scalar_select %p87, %s88, %s89
      %p93 = pneg %p87
      %p94 = scmp.eq.s32.totalorder %s14, 1
      %p95 = por %p93, %p94
      %p96 = scmp.ne.s32.totalorder %s88, %s91
      %p97 = scmp.eq.s32.totalorder %s14, 0
      %p98 = por %p96, %p97
      %p99 = scmp.ne.s32.totalorder %s88, %s91
      %p100 = scmp.eq.s32.totalorder %s19, 1
      %p101 = por %p99, %p100
      %p102 = scmp.ne.s32.totalorder %s91, %s92
      %p103 = scmp.eq.s32.totalorder %s19, 0
      %p104 = por %p102, %p103
      %p105 = scmp.ne.s32.totalorder %s91, %s92
      %p106 = scmp.eq.s32.totalorder %s20, 1
      %p107 = por %p105, %p106
      %p109 = scmp.ne.s32.totalorder %s92, %s108
      %p110 = scmp.eq.s32.totalorder %s20, 0
      %p111 = por %p109, %p110
      %s112 = ssub.s32 %s21, %s33
      %p113 = scmp.eq.s32.totalorder %s112, 0
      %s115 = sadd.s32 %s114, 1
      %s116 = scalar_select %p113, %s114, %s115
      %p119 = pneg %p113
      %p120 = scmp.eq.s32.totalorder %s14, 1
      %p121 = por %p119, %p120
      %p122 = scmp.ne.s32.totalorder %s114, %s117
      %p123 = scmp.eq.s32.totalorder %s14, 0
      %p124 = por %p122, %p123
      %p125 = scmp.ne.s32.totalorder %s114, %s117
      %p126 = scmp.eq.s32.totalorder %s19, 1
      %p127 = por %p125, %p126
      %p128 = scmp.ne.s32.totalorder %s117, %s118
      %p129 = scmp.eq.s32.totalorder %s19, 0
      %p130 = por %p128, %p129
      %p131 = scmp.ne.s32.totalorder %s117, %s118
      %p132 = scmp.eq.s32.totalorder %s20, 1
      %p133 = por %p131, %p132
      %p135 = scmp.ne.s32.totalorder %s118, %s134
      %p136 = scmp.eq.s32.totalorder %s20, 0
      %p137 = por %p135, %p136
      %p138 = scmp.le.s32.totalorder 1, %s14
      %p139 = scmp.lt.s32.totalorder %s14, 3
      %p140 = pnand %p138, %p139
      %p141 = pneg %p140
      // Predicated region
      $region9: #{tpu_custom_call.1} parent=5 // pred_check
        _
      $region10: #{tpu_custom_call.1} parent=5 // pred_check_branch
        %143 = sbr.rel (%p140) target = $region12
      $region11: #{tpu_custom_call.1} parent=5 // pred_region
        %s144 = ssub.s32 %s14, 1
        // Predicated region
        $region13: #{tpu_custom_call.1} parent=11 // pred_check
          %p145 = pneg %p52
        $region14: #{tpu_custom_call.1} parent=11 // pred_check_branch
          %147 = sbr.rel (%p145) target = $region16
        $region15: #{tpu_custom_call.1} parent=11 // pred_region
          %s148 = smul.u32 2, %s23
          %150 = vsyncadd [#allocation4], 0
          %s151 = smul.addr %s148, 2
          %s152 = smul.addr %s151, 8
          %s153 = scalar_lea.hbm %s0, %s152
          %s154 = sshll.u32 %s153, 4
          %s155 = int_to_ptr.hbm [resolvable:$true] %s154
          %s156 = sshll.u32 [#allocation3], 4
          %s157 = int_to_ptr.vmem [resolvable:$true] %s156
          %162 = dma.hbm_to_vmem [thread:$0]  %s155, 512, %s157, [#allocation4], 256, 256, 16
        $region16: #{tpu_custom_call.1} parent=11 // pred_fallthru
          _
      $region12: #{tpu_custom_call.1} parent=5 // pred_fallthru
        _
      %p163 = scmp.lt.s32.totalorder %s14, 2
      // Predicated region
      $region17: #{tpu_custom_call.1} parent=5 // pred_check
        %p164 = pneg %p163
      $region18: #{tpu_custom_call.1} parent=5 // pred_check_branch
        %166 = sbr.rel (%p164) target = $region20
      $region19: #{tpu_custom_call.1} parent=5 // pred_region
        // Predicated region
        $region21: #{tpu_custom_call.1} parent=19 // pred_check
          %p167 = pneg %p72
        $region22: #{tpu_custom_call.1} parent=19 // pred_check_branch
          %169 = sbr.rel (%p167) target = $region24
        $region23: #{tpu_custom_call.1} parent=19 // pred_region
          %s170 = sand.u32 %s14, 1
          %s171 = scalar_lea.sflag [#allocation7], %s170
          %s172 = sand.u32 %s62, 1
          %s173 = smul.addr %s172, 1024
          %s174 = scalar_lea.vmem [#allocation6], %s173
          %s175 = smul.u32 4, %s22
          %177 = vsyncadd %s171, 0
          %s178 = smul.addr %s175, 8
          %s179 = scalar_lea.hbm %s1, %s178
          %s180 = sshll.u32 %s179, 4
          %s181 = int_to_ptr.hbm [resolvable:$true] %s180
          %s182 = sshll.u32 %s174, 4
          %s183 = int_to_ptr.vmem [resolvable:$true] %s182
          %188 = dma.hbm_to_vmem [thread:$0]  %s181, 16384, %s183, %s171, 1024, 512, 32
        $region24: #{tpu_custom_call.1} parent=19 // pred_fallthru
          _
        // Predicated region
        $region25: #{tpu_custom_call.1} parent=19 // pred_check
          %p189 = pneg %p98
        $region26: #{tpu_custom_call.1} parent=19 // pred_check_branch
          %191 = sbr.rel (%p189) target = $region28
        $region27: #{tpu_custom_call.1} parent=19 // pred_region
          %s192 = sand.u32 %s14, 1
          %s193 = scalar_lea.sflag [#allocation7], %s192
          %s194 = sand.u32 %s88, 1
          %s195 = smul.addr %s194, 512
          %s196 = scalar_lea.vmem [#allocation8], %s195
          %s197 = smul.u32 32, %s22
          %199 = vsyncadd %s193, 0
          %s200 = smul.addr %s197, 2
          %s201 = smul.addr %s200, 8
          %s202 = scalar_lea.hbm %s2, %s201
          %s203 = sshll.u32 %s202, 4
          %s204 = int_to_ptr.hbm [resolvable:$true] %s203
          %s205 = sshll.u32 %s196, 4
          %s206 = int_to_ptr.vmem [resolvable:$true] %s205
          %211 = dma.hbm_to_vmem [thread:$0]  %s204, 8192, %s206, %s193, 256, 256, 16
        $region28: #{tpu_custom_call.1} parent=19 // pred_fallthru
          _
      $region20: #{tpu_custom_call.1} parent=5 // pred_fallthru
        _
      %p212 = scmp.le.s32.totalorder 1, %s14
      %p213 = scmp.lt.s32.totalorder %s14, 3
      %p214 = pnand %p212, %p213
      %p215 = pneg %p214
      // Predicated region
      $region29: #{tpu_custom_call.1} parent=5 // pred_check
        _
      $region30: #{tpu_custom_call.1} parent=5 // pred_check_branch
        %217 = sbr.rel (%p214) target = $region32
      $region31: #{tpu_custom_call.1} parent=5 // pred_region
        %s218 = ssub.s32 %s14, 1
        // Predicated region
        $region33: #{tpu_custom_call.1} parent=31 // pred_check
          %p219 = pneg %p52
        $region34: #{tpu_custom_call.1} parent=31 // pred_check_branch
          %221 = sbr.rel (%p219) target = $region36
        $region35: #{tpu_custom_call.1} parent=31 // pred_region
          %223 = dma.done [#allocation4], 512
        $region36: #{tpu_custom_call.1} parent=31 // pred_fallthru
          _
        %s224 = sand.u32 %s19, 1
        %s225 = scalar_lea.sflag [#allocation7], %s224
        %s226 = sand.u32 %s65, 1
        %s227 = smul.addr %s226, 1024
        %s228 = scalar_lea.vmem [#allocation6], %s227
        // Predicated region
        $region37: #{tpu_custom_call.1} parent=31 // pred_check
          %p229 = pneg %p78
        $region38: #{tpu_custom_call.1} parent=31 // pred_check_branch
          %231 = sbr.rel (%p229) target = $region40
        $region39: #{tpu_custom_call.1} parent=31 // pred_region
          %233 = dma.done %s225, 16384
        $region40: #{tpu_custom_call.1} parent=31 // pred_fallthru
          _
        %s234 = sand.u32 %s19, 1
        %s235 = scalar_lea.sflag [#allocation7], %s234
        %s236 = sand.u32 %s91, 1
        %s237 = smul.addr %s236, 512
        %s238 = scalar_lea.vmem [#allocation8], %s237
        // Predicated region
        $region41: #{tpu_custom_call.1} parent=31 // pred_check
          %p239 = pneg %p104
        $region42: #{tpu_custom_call.1} parent=31 // pred_check_branch
          %241 = sbr.rel (%p239) target = $region44
        $region43: #{tpu_custom_call.1} parent=31 // pred_region
          %243 = dma.done %s235, 8192
        $region44: #{tpu_custom_call.1} parent=31 // pred_fallthru
          _
        %p244 = pneg %p52
        %p245 = pneg %p49
        %s246 = sand.u32 %s19, 1
        %s247 = scalar_lea.sflag [#allocation7], %s246
        %s248 = sand.u32 %s65, 1
        %s249 = smul.addr %s248, 1024
        %s250 = scalar_lea.vmem [#allocation6], %s249
        %p251 = pneg %p78
        %p252 = pneg %p75
        %s253 = sand.u32 %s19, 1
        %s254 = scalar_lea.sflag [#allocation7], %s253
        %s255 = sand.u32 %s91, 1
        %s256 = smul.addr %s255, 512
        %s257 = scalar_lea.vmem [#allocation8], %s256
        %p258 = pneg %p104
        %p259 = pneg %p101
        %p260 = pneg %p130
        %p261 = pneg %p127
        %s262 = smul.u32 2, %s23
        %s263 = smul.u32 4, %s24
        %s264 = smul.u32 32, %s24
        %s265 = smul.u32 2, %s23
        %v266 = vld [vmem:[#allocation3] sm:$0xff]
        %v267 = vld [vmem:[#allocation3 + $0x8] sm:$0xff]
        %v268 = vld [vmem:[#allocation3 + $0x10] sm:$0xff]
        %v269 = vld [vmem:[#allocation3 + $0x18] sm:$0xff]
        %v270 = vld [vmem:[%s228] sm:$0xff]
        %v271 = vld [vmem:[%s228 + $0x8] sm:$0xff]
        %v272 = vld [vmem:[%s228 + $0x10] sm:$0xff]
        %v273 = vld [vmem:[%s228 + $0x18] sm:$0xff]
        %v274 = vld [vmem:[%s228 + $0x20] sm:$0xff]
        %v275 = vld [vmem:[%s228 + $0x28] sm:$0xff]
        %v276 = vld [vmem:[%s228 + $0x30] sm:$0xff]
        %v277 = vld [vmem:[%s228 + $0x38] sm:$0xff]
        %v278 = vld [vmem:[%s228 + $0x40] sm:$0xff]
        %v279 = vld [vmem:[%s228 + $0x48] sm:$0xff]
        %v280 = vld [vmem:[%s228 + $0x50] sm:$0xff]
        %v281 = vld [vmem:[%s228 + $0x58] sm:$0xff]
        %v282 = vld [vmem:[%s228 + $0x60] sm:$0xff]
        %v283 = vld [vmem:[%s228 + $0x68] sm:$0xff]
        %v284 = vld [vmem:[%s228 + $0x70] sm:$0xff]
        %v285 = vld [vmem:[%s228 + $0x78] sm:$0xff]
        %v286 = vld [vmem:[%s228 + $0x80] sm:$0xff]
        %v287 = vld [vmem:[%s228 + $0x88] sm:$0xff]
        %v288 = vld [vmem:[%s228 + $0x90] sm:$0xff]
        %v289 = vld [vmem:[%s228 + $0x98] sm:$0xff]
        %v290 = vld [vmem:[%s228 + $0xa0] sm:$0xff]
        %v291 = vld [vmem:[%s228 + $0xa8] sm:$0xff]
        %v292 = vld [vmem:[%s228 + $0xb0] sm:$0xff]
        %v293 = vld [vmem:[%s228 + $0xb8] sm:$0xff]
        %v294 = vld [vmem:[%s228 + $0xc0] sm:$0xff]
        %v295 = vld [vmem:[%s228 + $0xc8] sm:$0xff]
        %v296 = vld [vmem:[%s228 + $0xd0] sm:$0xff]
        %v297 = vld [vmem:[%s228 + $0xd8] sm:$0xff]
        %v298 = vld [vmem:[%s228 + $0xe0] sm:$0xff]
        %v299 = vld [vmem:[%s228 + $0xe8] sm:$0xff]
        %v300 = vld [vmem:[%s228 + $0xf0] sm:$0xff]
        %v301 = vld [vmem:[%s228 + $0xf8] sm:$0xff]
        %v302 = vld [vmem:[%s228 + $0x100] sm:$0xff]
        %v303 = vld [vmem:[%s228 + $0x108] sm:$0xff]
        %v304 = vld [vmem:[%s228 + $0x110] sm:$0xff]
        %v305 = vld [vmem:[%s228 + $0x118] sm:$0xff]
        %v306 = vld [vmem:[%s228 + $0x120] sm:$0xff]
        %v307 = vld [vmem:[%s228 + $0x128] sm:$0xff]
        %v308 = vld [vmem:[%s228 + $0x130] sm:$0xff]
        %v309 = vld [vmem:[%s228 + $0x138] sm:$0xff]
        %v310 = vld [vmem:[%s228 + $0x140] sm:$0xff]
        %v311 = vld [vmem:[%s228 + $0x148] sm:$0xff]
        %v312 = vld [vmem:[%s228 + $0x150] sm:$0xff]
        %v313 = vld [vmem:[%s228 + $0x158] sm:$0xff]
        %v314 = vld [vmem:[%s228 + $0x160] sm:$0xff]
        %v315 = vld [vmem:[%s228 + $0x168] sm:$0xff]
        %v316 = vld [vmem:[%s228 + $0x170] sm:$0xff]
        %v317 = vld [vmem:[%s228 + $0x178] sm:$0xff]
        %v318 = vld [vmem:[%s228 + $0x180] sm:$0xff]
        %v319 = vld [vmem:[%s228 + $0x188] sm:$0xff]
        %v320 = vld [vmem:[%s228 + $0x190] sm:$0xff]
        %v321 = vld [vmem:[%s228 + $0x198] sm:$0xff]
        %v322 = vld [vmem:[%s228 + $0x1a0] sm:$0xff]
        %v323 = vld [vmem:[%s228 + $0x1a8] sm:$0xff]
        %v324 = vld [vmem:[%s228 + $0x1b0] sm:$0xff]
        %v325 = vld [vmem:[%s228 + $0x1b8] sm:$0xff]
        %v326 = vld [vmem:[%s228 + $0x1c0] sm:$0xff]
        %v327 = vld [vmem:[%s228 + $0x1c8] sm:$0xff]
        %v328 = vld [vmem:[%s228 + $0x1d0] sm:$0xff]
        %v329 = vld [vmem:[%s228 + $0x1d8] sm:$0xff]
        %v330 = vld [vmem:[%s228 + $0x1e0] sm:$0xff]
        %v331 = vld [vmem:[%s228 + $0x1e8] sm:$0xff]
        %v332 = vld [vmem:[%s228 + $0x1f0] sm:$0xff]
        %v333 = vld [vmem:[%s228 + $0x1f8] sm:$0xff]
        %v334 = vld [vmem:[%s228 + $0x200] sm:$0xff]
        %v335 = vld [vmem:[%s228 + $0x208] sm:$0xff]
        %v336 = vld [vmem:[%s228 + $0x210] sm:$0xff]
        %v337 = vld [vmem:[%s228 + $0x218] sm:$0xff]
        %v338 = vld [vmem:[%s228 + $0x220] sm:$0xff]
        %v339 = vld [vmem:[%s228 + $0x228] sm:$0xff]
        %v340 = vld [vmem:[%s228 + $0x230] sm:$0xff]
        %v341 = vld [vmem:[%s228 + $0x238] sm:$0xff]
        %v342 = vld [vmem:[%s228 + $0x240] sm:$0xff]
        %v343 = vld [vmem:[%s228 + $0x248] sm:$0xff]
        %v344 = vld [vmem:[%s228 + $0x250] sm:$0xff]
        %v345 = vld [vmem:[%s228 + $0x258] sm:$0xff]
        %v346 = vld [vmem:[%s228 + $0x260] sm:$0xff]
        %v347 = vld [vmem:[%s228 + $0x268] sm:$0xff]
        %v348 = vld [vmem:[%s228 + $0x270] sm:$0xff]
        %v349 = vld [vmem:[%s228 + $0x278] sm:$0xff]
        %v350 = vld [vmem:[%s228 + $0x280] sm:$0xff]
        %v351 = vld [vmem:[%s228 + $0x288] sm:$0xff]
        %v352 = vld [vmem:[%s228 + $0x290] sm:$0xff]
        %v353 = vld [vmem:[%s228 + $0x298] sm:$0xff]
        %v354 = vld [vmem:[%s228 + $0x2a0] sm:$0xff]
        %v355 = vld [vmem:[%s228 + $0x2a8] sm:$0xff]
        %v356 = vld [vmem:[%s228 + $0x2b0] sm:$0xff]
        %v357 = vld [vmem:[%s228 + $0x2b8] sm:$0xff]
        %v358 = vld [vmem:[%s228 + $0x2c0] sm:$0xff]
        %v359 = vld [vmem:[%s228 + $0x2c8] sm:$0xff]
        %v360 = vld [vmem:[%s228 + $0x2d0] sm:$0xff]
        %v361 = vld [vmem:[%s228 + $0x2d8] sm:$0xff]
        %v362 = vld [vmem:[%s228 + $0x2e0] sm:$0xff]
        %v363 = vld [vmem:[%s228 + $0x2e8] sm:$0xff]
        %v364 = vld [vmem:[%s228 + $0x2f0] sm:$0xff]
        %v365 = vld [vmem:[%s228 + $0x2f8] sm:$0xff]
        %v366 = vld [vmem:[%s228 + $0x300] sm:$0xff]
        %v367 = vld [vmem:[%s228 + $0x308] sm:$0xff]
        %v368 = vld [vmem:[%s228 + $0x310] sm:$0xff]
        %v369 = vld [vmem:[%s228 + $0x318] sm:$0xff]
        %v370 = vld [vmem:[%s228 + $0x320] sm:$0xff]
        %v371 = vld [vmem:[%s228 + $0x328] sm:$0xff]
        %v372 = vld [vmem:[%s228 + $0x330] sm:$0xff]
        %v373 = vld [vmem:[%s228 + $0x338] sm:$0xff]
        %v374 = vld [vmem:[%s228 + $0x340] sm:$0xff]
        %v375 = vld [vmem:[%s228 + $0x348] sm:$0xff]
        %v376 = vld [vmem:[%s228 + $0x350] sm:$0xff]
        %v377 = vld [vmem:[%s228 + $0x358] sm:$0xff]
        %v378 = vld [vmem:[%s228 + $0x360] sm:$0xff]
        %v379 = vld [vmem:[%s228 + $0x368] sm:$0xff]
        %v380 = vld [vmem:[%s228 + $0x370] sm:$0xff]
        %v381 = vld [vmem:[%s228 + $0x378] sm:$0xff]
        %v382 = vld [vmem:[%s228 + $0x380] sm:$0xff]
        %v383 = vld [vmem:[%s228 + $0x388] sm:$0xff]
        %v384 = vld [vmem:[%s228 + $0x390] sm:$0xff]
        %v385 = vld [vmem:[%s228 + $0x398] sm:$0xff]
        %v386 = vld [vmem:[%s228 + $0x3a0] sm:$0xff]
        %v387 = vld [vmem:[%s228 + $0x3a8] sm:$0xff]
        %v388 = vld [vmem:[%s228 + $0x3b0] sm:$0xff]
        %v389 = vld [vmem:[%s228 + $0x3b8] sm:$0xff]
        %v390 = vld [vmem:[%s228 + $0x3c0] sm:$0xff]
        %v391 = vld [vmem:[%s228 + $0x3c8] sm:$0xff]
        %v392 = vld [vmem:[%s228 + $0x3d0] sm:$0xff]
        %v393 = vld [vmem:[%s228 + $0x3d8] sm:$0xff]
        %v394 = vld [vmem:[%s228 + $0x3e0] sm:$0xff]
        %v395 = vld [vmem:[%s228 + $0x3e8] sm:$0xff]
        %v396 = vld [vmem:[%s228 + $0x3f0] sm:$0xff]
        %v397 = vld [vmem:[%s228 + $0x3f8] sm:$0xff]
        %398 = vmatpush.msra.mxu0 %v330
        %399 = vmatpush.msra.mxu0 %v326
        %400 = vmatpush.msra.mxu0 %v322
        %401 = vmatpush.msra.mxu0 %v318
        %402 = vmatpush.msra.mxu0 %v314
        %403 = vmatpush.msra.mxu0 %v310
        %404 = vmatpush.msra.mxu0 %v306
        %405 = vmatpush.msra.mxu0 %v302
        %406 = vmatpush.msra.mxu0 %v298
        %407 = vmatpush.msra.mxu0 %v294
        %408 = vmatpush.msra.mxu0 %v290
        %409 = vmatpush.msra.mxu0 %v286
        %410 = vmatpush.msra.mxu0 %v282
        %411 = vmatpush.msra.mxu0 %v278
        %412 = vmatpush.msra.mxu0 %v274
        %413 = vmatpush.msra.mxu0 %v270
        %414 = vmatmul.f32.gmra.mxu0 %v266
        %v415 = vpop.f32.mrf.mxu0
        %v416 = vadd.f32 0.0, %v415
        %417 = vmatmul.f32.gmra.mxu0 %v268
        %v418 = vpop.f32.mrf.mxu0
        %v419 = vadd.f32 0.0, %v418
        %420 = vdwg.mxu0
        %421 = vmatpush.msra.mxu0 %v394
        %422 = vmatpush.msra.mxu0 %v390
        %423 = vmatpush.msra.mxu0 %v386
        %424 = vmatpush.msra.mxu0 %v382
        %425 = vmatpush.msra.mxu0 %v378
        %426 = vmatpush.msra.mxu0 %v374
        %427 = vmatpush.msra.mxu0 %v370
        %428 = vmatpush.msra.mxu0 %v366
        %429 = vmatpush.msra.mxu0 %v362
        %430 = vmatpush.msra.mxu0 %v358
        %431 = vmatpush.msra.mxu0 %v354
        %432 = vmatpush.msra.mxu0 %v350
        %433 = vmatpush.msra.mxu0 %v346
        %434 = vmatpush.msra.mxu0 %v342
        %435 = vmatpush.msra.mxu0 %v338
        %436 = vmatpush.msra.mxu0 %v334
        %437 = vmatmul.f32.gmra.mxu0 %v267
        %v438 = vpop.f32.mrf.mxu0
        %v439 = vadd.f32 %v416, %v438
        %440 = vmatmul.f32.gmra.mxu0 %v269
        %v441 = vpop.f32.mrf.mxu0
        %v442 = vadd.f32 %v419, %v441
        %443 = vdwg.mxu0
        %444 = vmatpush.msra.mxu0 %v331
        %445 = vmatpush.msra.mxu0 %v327
        %446 = vmatpush.msra.mxu0 %v323
        %447 = vmatpush.msra.mxu0 %v319
        %448 = vmatpush.msra.mxu0 %v315
        %449 = vmatpush.msra.mxu0 %v311
        %450 = vmatpush.msra.mxu0 %v307
        %451 = vmatpush.msra.mxu0 %v303
        %452 = vmatpush.msra.mxu0 %v299
        %453 = vmatpush.msra.mxu0 %v295
        %454 = vmatpush.msra.mxu0 %v291
        %455 = vmatpush.msra.mxu0 %v287
        %456 = vmatpush.msra.mxu0 %v283
        %457 = vmatpush.msra.mxu0 %v279
        %458 = vmatpush.msra.mxu0 %v275
        %459 = vmatpush.msra.mxu0 %v271
        %460 = vmatmul.f32.gmra.mxu0 %v266
        %v461 = vpop.f32.mrf.mxu0
        %v462 = vadd.f32 0.0, %v461
        %463 = vmatmul.f32.gmra.mxu0 %v268
        %v464 = vpop.f32.mrf.mxu0
        %v465 = vadd.f32 0.0, %v464
        %466 = vdwg.mxu0
        %467 = vmatpush.msra.mxu0 %v395
        %468 = vmatpush.msra.mxu0 %v391
        %469 = vmatpush.msra.mxu0 %v387
        %470 = vmatpush.msra.mxu0 %v383
        %471 = vmatpush.msra.mxu0 %v379
        %472 = vmatpush.msra.mxu0 %v375
        %473 = vmatpush.msra.mxu0 %v371
        %474 = vmatpush.msra.mxu0 %v367
        %475 = vmatpush.msra.mxu0 %v363
        %476 = vmatpush.msra.mxu0 %v359
        %477 = vmatpush.msra.mxu0 %v355
        %478 = vmatpush.msra.mxu0 %v351
        %479 = vmatpush.msra.mxu0 %v347
        %480 = vmatpush.msra.mxu0 %v343
        %481 = vmatpush.msra.mxu0 %v339
        %482 = vmatpush.msra.mxu0 %v335
        %483 = vmatmul.f32.gmra.mxu0 %v267
        %v484 = vpop.f32.mrf.mxu0
        %v485 = vadd.f32 %v462, %v484
        %486 = vmatmul.f32.gmra.mxu0 %v269
        %v487 = vpop.f32.mrf.mxu0
        %v488 = vadd.f32 %v465, %v487
        %489 = vdwg.mxu0
        %490 = vmatpush.msra.mxu0 %v332
        %491 = vmatpush.msra.mxu0 %v328
        %492 = vmatpush.msra.mxu0 %v324
        %493 = vmatpush.msra.mxu0 %v320
        %494 = vmatpush.msra.mxu0 %v316
        %495 = vmatpush.msra.mxu0 %v312
        %496 = vmatpush.msra.mxu0 %v308
        %497 = vmatpush.msra.mxu0 %v304
        %498 = vmatpush.msra.mxu0 %v300
        %499 = vmatpush.msra.mxu0 %v296
        %500 = vmatpush.msra.mxu0 %v292
        %501 = vmatpush.msra.mxu0 %v288
        %502 = vmatpush.msra.mxu0 %v284
        %503 = vmatpush.msra.mxu0 %v280
        %504 = vmatpush.msra.mxu0 %v276
        %505 = vmatpush.msra.mxu0 %v272
        %506 = vmatmul.f32.gmra.mxu0 %v266
        %v507 = vpop.f32.mrf.mxu0
        %v508 = vadd.f32 0.0, %v507
        %509 = vmatmul.f32.gmra.mxu0 %v268
        %v510 = vpop.f32.mrf.mxu0
        %v511 = vadd.f32 0.0, %v510
        %512 = vdwg.mxu0
        %513 = vmatpush.msra.mxu0 %v396
        %514 = vmatpush.msra.mxu0 %v392
        %515 = vmatpush.msra.mxu0 %v388
        %516 = vmatpush.msra.mxu0 %v384
        %517 = vmatpush.msra.mxu0 %v380
        %518 = vmatpush.msra.mxu0 %v376
        %519 = vmatpush.msra.mxu0 %v372
        %520 = vmatpush.msra.mxu0 %v368
        %521 = vmatpush.msra.mxu0 %v364
        %522 = vmatpush.msra.mxu0 %v360
        %523 = vmatpush.msra.mxu0 %v356
        %524 = vmatpush.msra.mxu0 %v352
        %525 = vmatpush.msra.mxu0 %v348
        %526 = vmatpush.msra.mxu0 %v344
        %527 = vmatpush.msra.mxu0 %v340
        %528 = vmatpush.msra.mxu0 %v336
        %529 = vmatmul.f32.gmra.mxu0 %v267
        %v530 = vpop.f32.mrf.mxu0
        %v531 = vadd.f32 %v508, %v530
        %532 = vmatmul.f32.gmra.mxu0 %v269
        %v533 = vpop.f32.mrf.mxu0
        %v534 = vadd.f32 %v511, %v533
        %535 = vdwg.mxu0
        %536 = vmatpush.msra.mxu0 %v333
        %537 = vmatpush.msra.mxu0 %v329
        %538 = vmatpush.msra.mxu0 %v325
        %539 = vmatpush.msra.mxu0 %v321
        %540 = vmatpush.msra.mxu0 %v317
        %541 = vmatpush.msra.mxu0 %v313
        %542 = vmatpush.msra.mxu0 %v309
        %543 = vmatpush.msra.mxu0 %v305
        %544 = vmatpush.msra.mxu0 %v301
        %545 = vmatpush.msra.mxu0 %v297
        %546 = vmatpush.msra.mxu0 %v293
        %547 = vmatpush.msra.mxu0 %v289
        %548 = vmatpush.msra.mxu0 %v285
        %549 = vmatpush.msra.mxu0 %v281
        %550 = vmatpush.msra.mxu0 %v277
        %551 = vmatpush.msra.mxu0 %v273
        %552 = vmatmul.f32.gmra.mxu0 %v266
        %v553 = vpop.f32.mrf.mxu0
        %v554 = vadd.f32 0.0, %v553
        %555 = vmatmul.f32.gmra.mxu0 %v268
        %v556 = vpop.f32.mrf.mxu0
        %v557 = vadd.f32 0.0, %v556
        %558 = vdwg.mxu0
        %559 = vmatpush.msra.mxu0 %v397
        %560 = vmatpush.msra.mxu0 %v393
        %561 = vmatpush.msra.mxu0 %v389
        %562 = vmatpush.msra.mxu0 %v385
        %563 = vmatpush.msra.mxu0 %v381
        %564 = vmatpush.msra.mxu0 %v377
        %565 = vmatpush.msra.mxu0 %v373
        %566 = vmatpush.msra.mxu0 %v369
        %567 = vmatpush.msra.mxu0 %v365
        %568 = vmatpush.msra.mxu0 %v361
        %569 = vmatpush.msra.mxu0 %v357
        %570 = vmatpush.msra.mxu0 %v353
        %571 = vmatpush.msra.mxu0 %v349
        %572 = vmatpush.msra.mxu0 %v345
        %573 = vmatpush.msra.mxu0 %v341
        %574 = vmatpush.msra.mxu0 %v337
        %575 = vmatmul.f32.gmra.mxu0 %v267
        %v576 = vpop.f32.mrf.mxu0
        %v577 = vadd.f32 %v554, %v576
        %578 = vmatmul.f32.gmra.mxu0 %v269
        %v579 = vpop.f32.mrf.mxu0
        %v580 = vadd.f32 %v557, %v579
        %581 = vdwg.mxu0
        %v582 = vxor.u32 %v439, 2147483648
        %v583 = vxor.u32 %v485, 2147483648
        %v584 = vxor.u32 %v442, 2147483648
        %v585 = vxor.u32 %v488, 2147483648
        %v586 = vmul.f32 %v582, 1.442695
        %v587 = vpow.pop %v586
        %v588 = vmul.f32 %v583, 1.442695
        %v589 = vpow.pop %v588
        %v590 = vmul.f32 %v584, 1.442695
        %v591 = vpow.pop %v590
        %v592 = vmul.f32 %v585, 1.442695
        %v593 = vpow.pop %v592
        %v594 = vadd.f32 %v587, 1.0
        %v595 = vadd.f32 %v589, 1.0
        %v596 = vadd.f32 %v591, 1.0
        %v597 = vadd.f32 %v593, 1.0
        %v598 = vrcp.pop %v594
        %v599 = vmul.f32 %v594, %v598
        %v600 = vsub.f32 1.0, %v599
        %v601 = vmul.f32 %v598, %v600
        %v602 = vadd.f32 %v598, %v601
        %vm603 = vweird.f32 %v594
        %vm604 = vweird.f32 %v598
        %vm605 = vmor %vm603, %vm604
        %v606 = vsel %vm605, %v598, %v602
        %v607 = vand.u32 2147483647, %v594
        %vm608 = vcmp.eq.f32.partialorder %v607, 8.507059e+37
        %v609 = vand.u32 %v594, 2147483648
        %v610 = vor.u32 1.1754944e-38, %v609
        %v611 = vsel %vm608, %v610, %v606
        %v612 = vmul.f32 1.0, %v611
        %v613 = vrcp.pop %v595
        %v614 = vmul.f32 %v595, %v613
        %v615 = vsub.f32 1.0, %v614
        %v616 = vmul.f32 %v613, %v615
        %v617 = vadd.f32 %v613, %v616
        %vm618 = vweird.f32 %v595
        %vm619 = vweird.f32 %v613
        %vm620 = vmor %vm618, %vm619
        %v621 = vsel %vm620, %v613, %v617
        %v622 = vand.u32 2147483647, %v595
        %vm623 = vcmp.eq.f32.partialorder %v622, 8.507059e+37
        %v624 = vand.u32 %v595, 2147483648
        %v625 = vor.u32 1.1754944e-38, %v624
        %v626 = vsel %vm623, %v625, %v621
        %v627 = vmul.f32 1.0, %v626
        %v628 = vrcp.pop %v596
        %v629 = vmul.f32 %v596, %v628
        %v630 = vsub.f32 1.0, %v629
        %v631 = vmul.f32 %v628, %v630
        %v632 = vadd.f32 %v628, %v631
        %vm633 = vweird.f32 %v596
        %vm634 = vweird.f32 %v628
        %vm635 = vmor %vm633, %vm634
        %v636 = vsel %vm635, %v628, %v632
        %v637 = vand.u32 2147483647, %v596
        %vm638 = vcmp.eq.f32.partialorder %v637, 8.507059e+37
        %v639 = vand.u32 %v596, 2147483648
        %v640 = vor.u32 1.1754944e-38, %v639
        %v641 = vsel %vm638, %v640, %v636
        %v642 = vmul.f32 1.0, %v641
        %v643 = vrcp.pop %v597
        %v644 = vmul.f32 %v597, %v643
        %v645 = vsub.f32 1.0, %v644
        %v646 = vmul.f32 %v643, %v645
        %v647 = vadd.f32 %v643, %v646
        %vm648 = vweird.f32 %v597
        %vm649 = vweird.f32 %v643
        %vm650 = vmor %vm648, %vm649
        %v651 = vsel %vm650, %v643, %v647
        %v652 = vand.u32 2147483647, %v597
        %vm653 = vcmp.eq.f32.partialorder %v652, 8.507059e+37
        %v654 = vand.u32 %v597, 2147483648
        %v655 = vor.u32 1.1754944e-38, %v654
        %v656 = vsel %vm653, %v655, %v651
        %v657 = vmul.f32 1.0, %v656
        %v658 = vmul.f32 %v439, %v612
        %v659 = vmul.f32 %v485, %v627
        %v660 = vmul.f32 %v442, %v642
        %v661 = vmul.f32 %v488, %v657
        %v662 = vmul.f32 %v658, %v531
        %v663 = vmul.f32 %v659, %v577
        %v664 = vmul.f32 %v660, %v534
        %v665 = vmul.f32 %v661, %v580
        %v666 = vld [vmem:[%s238] sm:$0xff]
        %v667 = vld [vmem:[%s238 + $0x8] sm:$0xff]
        %v668 = vld [vmem:[%s238 + $0x10] sm:$0xff]
        %v669 = vld [vmem:[%s238 + $0x18] sm:$0xff]
        %v670 = vld [vmem:[%s238 + $0x20] sm:$0xff]
        %v671 = vld [vmem:[%s238 + $0x28] sm:$0xff]
        %v672 = vld [vmem:[%s238 + $0x30] sm:$0xff]
        %v673 = vld [vmem:[%s238 + $0x38] sm:$0xff]
        %v674 = vld [vmem:[%s238 + $0x40] sm:$0xff]
        %v675 = vld [vmem:[%s238 + $0x48] sm:$0xff]
        %v676 = vld [vmem:[%s238 + $0x50] sm:$0xff]
        %v677 = vld [vmem:[%s238 + $0x58] sm:$0xff]
        %v678 = vld [vmem:[%s238 + $0x60] sm:$0xff]
        %v679 = vld [vmem:[%s238 + $0x68] sm:$0xff]
        %v680 = vld [vmem:[%s238 + $0x70] sm:$0xff]
        %v681 = vld [vmem:[%s238 + $0x78] sm:$0xff]
        %v682 = vld [vmem:[%s238 + $0x80] sm:$0xff]
        %v683 = vld [vmem:[%s238 + $0x88] sm:$0xff]
        %v684 = vld [vmem:[%s238 + $0x90] sm:$0xff]
        %v685 = vld [vmem:[%s238 + $0x98] sm:$0xff]
        %v686 = vld [vmem:[%s238 + $0xa0] sm:$0xff]
        %v687 = vld [vmem:[%s238 + $0xa8] sm:$0xff]
        %v688 = vld [vmem:[%s238 + $0xb0] sm:$0xff]
        %v689 = vld [vmem:[%s238 + $0xb8] sm:$0xff]
        %v690 = vld [vmem:[%s238 + $0xc0] sm:$0xff]
        %v691 = vld [vmem:[%s238 + $0xc8] sm:$0xff]
        %v692 = vld [vmem:[%s238 + $0xd0] sm:$0xff]
        %v693 = vld [vmem:[%s238 + $0xd8] sm:$0xff]
        %v694 = vld [vmem:[%s238 + $0xe0] sm:$0xff]
        %v695 = vld [vmem:[%s238 + $0xe8] sm:$0xff]
        %v696 = vld [vmem:[%s238 + $0xf0] sm:$0xff]
        %v697 = vld [vmem:[%s238 + $0xf8] sm:$0xff]
        %v698 = vld [vmem:[%s238 + $0x100] sm:$0xff]
        %v699 = vld [vmem:[%s238 + $0x108] sm:$0xff]
        %v700 = vld [vmem:[%s238 + $0x110] sm:$0xff]
        %v701 = vld [vmem:[%s238 + $0x118] sm:$0xff]
        %v702 = vld [vmem:[%s238 + $0x120] sm:$0xff]
        %v703 = vld [vmem:[%s238 + $0x128] sm:$0xff]
        %v704 = vld [vmem:[%s238 + $0x130] sm:$0xff]
        %v705 = vld [vmem:[%s238 + $0x138] sm:$0xff]
        %v706 = vld [vmem:[%s238 + $0x140] sm:$0xff]
        %v707 = vld [vmem:[%s238 + $0x148] sm:$0xff]
        %v708 = vld [vmem:[%s238 + $0x150] sm:$0xff]
        %v709 = vld [vmem:[%s238 + $0x158] sm:$0xff]
        %v710 = vld [vmem:[%s238 + $0x160] sm:$0xff]
        %v711 = vld [vmem:[%s238 + $0x168] sm:$0xff]
        %v712 = vld [vmem:[%s238 + $0x170] sm:$0xff]
        %v713 = vld [vmem:[%s238 + $0x178] sm:$0xff]
        %v714 = vld [vmem:[%s238 + $0x180] sm:$0xff]
        %v715 = vld [vmem:[%s238 + $0x188] sm:$0xff]
        %v716 = vld [vmem:[%s238 + $0x190] sm:$0xff]
        %v717 = vld [vmem:[%s238 + $0x198] sm:$0xff]
        %v718 = vld [vmem:[%s238 + $0x1a0] sm:$0xff]
        %v719 = vld [vmem:[%s238 + $0x1a8] sm:$0xff]
        %v720 = vld [vmem:[%s238 + $0x1b0] sm:$0xff]
        %v721 = vld [vmem:[%s238 + $0x1b8] sm:$0xff]
        %v722 = vld [vmem:[%s238 + $0x1c0] sm:$0xff]
        %v723 = vld [vmem:[%s238 + $0x1c8] sm:$0xff]
        %v724 = vld [vmem:[%s238 + $0x1d0] sm:$0xff]
        %v725 = vld [vmem:[%s238 + $0x1d8] sm:$0xff]
        %v726 = vld [vmem:[%s238 + $0x1e0] sm:$0xff]
        %v727 = vld [vmem:[%s238 + $0x1e8] sm:$0xff]
        %v728 = vld [vmem:[%s238 + $0x1f0] sm:$0xff]
        %v729 = vld [vmem:[%s238 + $0x1f8] sm:$0xff]
        %730 = vmatpush.msra.mxu0 %v696
        %731 = vmatpush.msra.mxu0 %v694
        %732 = vmatpush.msra.mxu0 %v692
        %733 = vmatpush.msra.mxu0 %v690
        %734 = vmatpush.msra.mxu0 %v688
        %735 = vmatpush.msra.mxu0 %v686
        %736 = vmatpush.msra.mxu0 %v684
        %737 = vmatpush.msra.mxu0 %v682
        %738 = vmatpush.msra.mxu0 %v680
        %739 = vmatpush.msra.mxu0 %v678
        %740 = vmatpush.msra.mxu0 %v676
        %741 = vmatpush.msra.mxu0 %v674
        %742 = vmatpush.msra.mxu0 %v672
        %743 = vmatpush.msra.mxu0 %v670
        %744 = vmatpush.msra.mxu0 %v668
        %745 = vmatpush.msra.mxu0 %v666
        %746 = vmatmul.f32.gmra.mxu0 %v662
        %v747 = vpop.f32.mrf.mxu0
        %v748 = vadd.f32 0.0, %v747
        %749 = vmatmul.f32.gmra.mxu0 %v664
        %v750 = vpop.f32.mrf.mxu0
        %v751 = vadd.f32 0.0, %v750
        %752 = vdwg.mxu0
        %753 = vmatpush.msra.mxu0 %v728
        %754 = vmatpush.msra.mxu0 %v726
        %755 = vmatpush.msra.mxu0 %v724
        %756 = vmatpush.msra.mxu0 %v722
        %757 = vmatpush.msra.mxu0 %v720
        %758 = vmatpush.msra.mxu0 %v718
        %759 = vmatpush.msra.mxu0 %v716
        %760 = vmatpush.msra.mxu0 %v714
        %761 = vmatpush.msra.mxu0 %v712
        %762 = vmatpush.msra.mxu0 %v710
        %763 = vmatpush.msra.mxu0 %v708
        %764 = vmatpush.msra.mxu0 %v706
        %765 = vmatpush.msra.mxu0 %v704
        %766 = vmatpush.msra.mxu0 %v702
        %767 = vmatpush.msra.mxu0 %v700
        %768 = vmatpush.msra.mxu0 %v698
        %769 = vmatmul.f32.gmra.mxu0 %v663
        %v770 = vpop.f32.mrf.mxu0
        %v771 = vadd.f32 %v748, %v770
        %772 = vmatmul.f32.gmra.mxu0 %v665
        %v773 = vpop.f32.mrf.mxu0
        %v774 = vadd.f32 %v751, %v773
        %775 = vdwg.mxu0
        %776 = vmatpush.msra.mxu0 %v697
        %777 = vmatpush.msra.mxu0 %v695
        %778 = vmatpush.msra.mxu0 %v693
        %779 = vmatpush.msra.mxu0 %v691
        %780 = vmatpush.msra.mxu0 %v689
        %781 = vmatpush.msra.mxu0 %v687
        %782 = vmatpush.msra.mxu0 %v685
        %783 = vmatpush.msra.mxu0 %v683
        %784 = vmatpush.msra.mxu0 %v681
        %785 = vmatpush.msra.mxu0 %v679
        %786 = vmatpush.msra.mxu0 %v677
        %787 = vmatpush.msra.mxu0 %v675
        %788 = vmatpush.msra.mxu0 %v673
        %789 = vmatpush.msra.mxu0 %v671
        %790 = vmatpush.msra.mxu0 %v669
        %791 = vmatpush.msra.mxu0 %v667
        %792 = vmatmul.f32.gmra.mxu0 %v662
        %v793 = vpop.f32.mrf.mxu0
        %v794 = vadd.f32 0.0, %v793
        %795 = vmatmul.f32.gmra.mxu0 %v664
        %v796 = vpop.f32.mrf.mxu0
        %v797 = vadd.f32 0.0, %v796
        %798 = vdwg.mxu0
        %799 = vmatpush.msra.mxu0 %v729
        %800 = vmatpush.msra.mxu0 %v727
        %801 = vmatpush.msra.mxu0 %v725
        %802 = vmatpush.msra.mxu0 %v723
        %803 = vmatpush.msra.mxu0 %v721
        %804 = vmatpush.msra.mxu0 %v719
        %805 = vmatpush.msra.mxu0 %v717
        %806 = vmatpush.msra.mxu0 %v715
        %807 = vmatpush.msra.mxu0 %v713
        %808 = vmatpush.msra.mxu0 %v711
        %809 = vmatpush.msra.mxu0 %v709
        %810 = vmatpush.msra.mxu0 %v707
        %811 = vmatpush.msra.mxu0 %v705
        %812 = vmatpush.msra.mxu0 %v703
        %813 = vmatpush.msra.mxu0 %v701
        %814 = vmatpush.msra.mxu0 %v699
        %815 = vmatmul.f32.gmra.mxu0 %v663
        %v816 = vpop.f32.mrf.mxu0
        %v817 = vadd.f32 %v794, %v816
        %818 = vmatmul.f32.gmra.mxu0 %v665
        %v819 = vpop.f32.mrf.mxu0
        %v820 = vadd.f32 %v797, %v819
        %821 = vdwg.mxu0
        %p822 = scmp.eq.s32.totalorder %s24, 0
        // Predicated region
        $region45: #{tpu_custom_call.1} parent=31 // pred_check
          %p823 = pneg %p822
        $region46: #{tpu_custom_call.1} parent=31 // pred_check_branch
          %825 = sbr.rel (%p823) target = $region48
        $region47: #{tpu_custom_call.1} parent=31 // pred_region
          %826 = vst [vmem:[#allocation2] sm:$0xff] %v771
          %827 = vst [vmem:[#allocation2 + $0x8] sm:$0xff] %v817
          %828 = vst [vmem:[#allocation2 + $0x10] sm:$0xff] %v774
          %829 = vst [vmem:[#allocation2 + $0x18] sm:$0xff] %v820
        $region48: #{tpu_custom_call.1} parent=31 // pred_fallthru
          _
        %p830 = scmp.gt.s32.totalorder %s24, 0
        // Predicated region
        $region49: #{tpu_custom_call.1} parent=31 // pred_check
          %p831 = pneg %p830
        $region50: #{tpu_custom_call.1} parent=31 // pred_check_branch
          %833 = sbr.rel (%p831) target = $region52
        $region51: #{tpu_custom_call.1} parent=31 // pred_region
          %v834 = vld [vmem:[#allocation2] sm:$0xff]
          %v835 = vld [vmem:[#allocation2 + $0x8] sm:$0xff]
          %v836 = vld [vmem:[#allocation2 + $0x10] sm:$0xff]
          %v837 = vld [vmem:[#allocation2 + $0x18] sm:$0xff]
          %v838 = vadd.f32 %v834, %v771
          %v839 = vadd.f32 %v835, %v817
          %v840 = vadd.f32 %v836, %v774
          %v841 = vadd.f32 %v837, %v820
          %842 = vst [vmem:[#allocation2] sm:$0xff] %v838
          %843 = vst [vmem:[#allocation2 + $0x8] sm:$0xff] %v839
          %844 = vst [vmem:[#allocation2 + $0x10] sm:$0xff] %v840
          %845 = vst [vmem:[#allocation2 + $0x18] sm:$0xff] %v841
        $region52: #{tpu_custom_call.1} parent=31 // pred_fallthru
          _
        %p846 = scmp.eq.s32.totalorder %s24, 1
        // Predicated region
        $region53: #{tpu_custom_call.1} parent=31 // pred_check
          %p847 = pneg %p846
        $region54: #{tpu_custom_call.1} parent=31 // pred_check_branch
          %849 = sbr.rel (%p847) target = $region56
        $region55: #{tpu_custom_call.1} parent=31 // pred_region
          %v850 = vld [vmem:[#allocation2] sm:$0xff]
          %v851 = vld [vmem:[#allocation2 + $0x8] sm:$0xff]
          %v852 = vld [vmem:[#allocation2 + $0x10] sm:$0xff]
          %v853 = vld [vmem:[#allocation2 + $0x18] sm:$0xff]
          %854 = vst [vmem:[#allocation9] sm:$0xff] %v850
          %855 = vst [vmem:[#allocation9 + $0x8] sm:$0xff] %v851
          %856 = vst [vmem:[#allocation9 + $0x10] sm:$0xff] %v852
          %857 = vst [vmem:[#allocation9 + $0x18] sm:$0xff] %v853
        $region56: #{tpu_custom_call.1} parent=31 // pred_fallthru
          _
        // Predicated region
        $region57: #{tpu_custom_call.1} parent=31 // pred_check
          %p858 = pneg %p127
        $region58: #{tpu_custom_call.1} parent=31 // pred_check_branch
          %860 = sbr.rel (%p858) target = $region60
        $region59: #{tpu_custom_call.1} parent=31 // pred_region
          %s861 = smul.u32 2, %s23
          %863 = vsyncadd [#allocation5], 0
          %s864 = smul.addr %s861, 2
          %s865 = smul.addr %s864, 8
          %s866 = scalar_lea.hbm %s3, %s865
          %s867 = sshll.u32 [#allocation9], 4
          %s868 = int_to_ptr.vmem [resolvable:$true] %s867
          %s869 = sshll.u32 %s866, 4
          %s870 = int_to_ptr.hbm [resolvable:$true] %s869
          %875 = dma.vmem_to_hbm [thread:$0]  %s868, 512, %s870, [#allocation5], 256, 256, 16
        $region60: #{tpu_custom_call.1} parent=31 // pred_fallthru
          _
        // Predicated region
        $region61: #{tpu_custom_call.1} parent=31 // pred_check
          %p876 = pneg %p127
        $region62: #{tpu_custom_call.1} parent=31 // pred_check_branch
          %878 = sbr.rel (%p876) target = $region64
        $region63: #{tpu_custom_call.1} parent=31 // pred_region
          %880 = dma.done [#allocation5], 512
        $region64: #{tpu_custom_call.1} parent=31 // pred_fallthru
          _
      $region32: #{tpu_custom_call.1} parent=5 // pred_fallthru
        _
      %p881 = scmp.le.s32.totalorder 2, %s14
      // Predicated region
      $region65: #{tpu_custom_call.1} parent=5 // pred_check
        %p882 = pneg %p881
      $region66: #{tpu_custom_call.1} parent=5 // pred_check_branch
        %884 = sbr.rel (%p882) target = $region68
      $region67: #{tpu_custom_call.1} parent=5 // pred_region
        %s885 = ssub.s32 %s14, 2
      $region68: #{tpu_custom_call.1} parent=5 // pred_fallthru
        _
    $region6: #{tpu_custom_call.1} parent=1 // loop_footer
      %s18 = sadd.s32 1, %s14
    $region7: #{tpu_custom_call.1} parent=1 // loop_footer_branch
      %13 = sbr.rel target = $region3
    $region8: #{tpu_custom_call.1} parent=1 // loop_exit
      _
    %886 = vsyncpa [#allocation4], 1
    %s887 = scalar_lea.sflag [#allocation4], 1
    %888 = vsyncpa %s887, 1
    %889 = vsyncpa [#allocation7], 1
    %s890 = scalar_lea.sflag [#allocation7], 1
    %891 = vsyncpa %s890, 1
    %892 = vsyncpa [#allocation5], 1
    %s893 = scalar_lea.sflag [#allocation5], 1
    %894 = vsyncpa %s893, 1

</llo_original>
